<compile_context>
chip_gen: v6e
topology: v6e:2x2x1
jax: 0.10.0
libtpu: 0.0.40
codegen_flags: <defaults>
</compile_context>

<pallas_src>
import functools

import jax
import jax.numpy as jnp
from jax.experimental import pallas as pl
from jax.experimental.pallas import tpu as pltpu


def _round_up(x: int, m: int) -> int:
    return ((x + m - 1) // m) * m


def _mlp_kernel(x_ref, w1_ref, b1_ref, w2_ref, b2_ref, o_ref, h_ref, acc_ref):
    j = pl.program_id(1)
    k = pl.program_id(2)

    @pl.when(k == 0)
    def _():
        acc_ref[...] = jnp.zeros_like(acc_ref)

    # fc1 for this hidden tile: computed once per (batch tile, hidden tile),
    # cached in VMEM scratch, reused for every output-N tile j.
    @pl.when(j == 0)
    def _():
        h = jnp.dot(x_ref[...], w1_ref[...], preferred_element_type=jnp.float32)
        h = jnp.maximum(h + b1_ref[...], 0.0)          # bias + ReLU in f32
        h_ref[k] = h.astype(h_ref.dtype)

    # fc2 partial product for this (hidden tile, output tile); f32 accumulate.
    acc_ref[...] += jnp.dot(h_ref[k], w2_ref[...],
                            preferred_element_type=jnp.float32)

    @pl.when(k == pl.num_programs(2) - 1)
    def _():
        o_ref[...] = (acc_ref[...] + b2_ref[...]).astype(o_ref.dtype)


@functools.partial(
    jax.jit,
    static_argnames=("out_dim", "tm", "tn", "tk", "compute_dtype"))
def _mlp_forward(x, w1_p, b1_p, w2_p, b2_p, *, out_dim, tm, tn, tk,
                 compute_dtype):
    """x: [B, in_dim]; weights already padded/cast (see PallasMLP)."""
    out_dtype = x.dtype
    B, in_dim = x.shape
    in_pad, hid_pad = w1_p.shape
    out_pad = w2_p.shape[1]
    w_dtype = w1_p.dtype

    if compute_dtype is not None:
        x = x.astype(compute_dtype)

    # Batch tile: multiple of the packed-sublane count of the compute dtype
    # (8 for 32-bit, 16 for bf16) so vregs stay dense.
    sublane = 16 if x.dtype == jnp.bfloat16 else 8
    tm = max(sublane, min(_round_up(tm, sublane), _round_up(B, sublane)))
    b_pad = _round_up(B, tm)

    x_p = jnp.pad(x, ((0, b_pad - B), (0, in_pad - in_dim)))

    num_i = b_pad // tm
    num_j = out_pad // tn
    num_k = hid_pad // tk
    grid = (num_i, num_j, num_k)

    w_item = jnp.dtype(w_dtype).itemsize
    x_item = jnp.dtype(x_p.dtype).itemsize
    out_item = jnp.dtype(out_dtype).itemsize

    # VMEM budget: double-buffered pipeline blocks + scratch, with headroom.
    vmem_est = (2 * (tm * in_pad * x_item          # x tile
                     + in_pad * tk * w_item        # W1 tile
                     + tk * 4 + tn * 4             # biases (f32)
                     + tk * tn * w_item            # W2 tile
                     + tm * tn * out_item)         # out tile
                + num_k * tm * tk * x_item         # fc1 activation cache
                + tm * tn * 4)                     # f32 accumulator
    vmem_limit = min(max(int(1.5 * vmem_est) + (1 << 20), 32 << 20), 64 << 20)

    flops = 2 * b_pad * in_pad * hid_pad + 2 * b_pad * hid_pad * out_pad
    bytes_accessed = (x_p.size * x_item
                      + w1_p.size * w_item + w2_p.size * w_item
                      + b1_p.size * 4 + b2_p.size * 4
                      + b_pad * out_pad * out_item)

    out_padded = pl.pallas_call(
        _mlp_kernel,
        out_shape=jax.ShapeDtypeStruct((b_pad, out_pad), out_dtype),
        grid_spec=pltpu.PrefetchScalarGridSpec(
            num_scalar_prefetch=0,
            grid=grid,
            in_specs=[
                # x tile: depends only on batch tile i (stays resident across j,k).
                pl.BlockSpec((tm, in_pad), lambda i, j, k: (i, 0)),
                # W1 / b1: hidden-tiled columns.
                pl.BlockSpec((in_pad, tk), lambda i, j, k: (0, k)),
                pl.BlockSpec((1, tk), lambda i, j, k: (0, k)),
                # W2 / b2: (hidden tile, output-N tile) blocks.
                pl.BlockSpec((tk, tn), lambda i, j, k: (k, j)),
                pl.BlockSpec((1, tn), lambda i, j, k: (0, j)),
            ],
            out_specs=pl.BlockSpec((tm, tn), lambda i, j, k: (i, j)),
            scratch_shapes=[
                pltpu.VMEM((num_k, tm, tk), x_p.dtype),   # fc1 activation cache
                pltpu.VMEM((tm, tn), jnp.float32),        # fc2 accumulator
            ],
        ),
        compiler_params=pltpu.CompilerParams(
            dimension_semantics=("parallel", "arbitrary", "arbitrary"),
            vmem_limit_bytes=vmem_limit),
        cost_estimate=pl.CostEstimate(
            flops=flops, transcendentals=0, bytes_accessed=bytes_accessed),
    )(x_p, w1_p, b1_p, w2_p, b2_p)

    return out_padded[:B, :out_dim]


class PallasMLP:
    """Fused Linear -> ReLU -> Linear. Weights padded/cast once at init."""

    def __init__(self, w1, b1, w2, b2, *, tm=256, tn=256, tk=512,
                 compute_dtype=None):
        in_dim, hid = w1.shape
        out_dim = w2.shape[1]
        self.in_dim, self.hid, self.out_dim = in_dim, hid, out_dim
        self.compute_dtype = compute_dtype
        w_dtype = compute_dtype if compute_dtype is not None else w1.dtype

        # Tile sizes: lane-dense multiples of 128, clamped to the problem.
        self.tm = tm
        self.tn = min(_round_up(tn, 128), _round_up(out_dim, 128))
        self.tk = min(_round_up(tk, 128), _round_up(hid, 128))

        in_pad = _round_up(in_dim, 128)
        hid_pad = _round_up(hid, self.tk)
        out_pad = _round_up(out_dim, self.tn)

        # Pad + cast ONCE (outside the per-call path).  Zero padding is exact:
        # padded hidden columns give ReLU(0) = 0 and hit zero rows of W2.
        self.w1_p = jnp.pad(w1.astype(w_dtype),
                            ((0, in_pad - in_dim), (0, hid_pad - hid)))
        self.b1_p = jnp.pad(b1.astype(jnp.float32).reshape(1, -1),
                            ((0, 0), (0, hid_pad - hid)))
        self.w2_p = jnp.pad(w2.astype(w_dtype),
                            ((0, hid_pad - hid), (0, out_pad - out_dim)))
        self.b2_p = jnp.pad(b2.astype(jnp.float32).reshape(1, -1),
                            ((0, 0), (0, out_pad - out_dim)))

    def __call__(self, x):
        lead = x.shape[:-1]
        x2 = x.reshape(-1, x.shape[-1])
        out = _mlp_forward(x2, self.w1_p, self.b1_p, self.w2_p, self.b2_p,
                           out_dim=self.out_dim, tm=self.tm, tn=self.tn,
                           tk=self.tk, compute_dtype=self.compute_dtype)
        return out.reshape(*lead, self.out_dim)


def init_mlp_params(key, input_dim, hidden_dim, output_dim, dtype=jnp.float32):
    """nn.Linear-style init; weights stored transposed as [in, out]."""
    k1, k2, k3, k4 = jax.random.split(key, 4)
    s1 = 1.0 / jnp.sqrt(input_dim)
    s2 = 1.0 / jnp.sqrt(hidden_dim)
    w1 = jax.random.uniform(k1, (input_dim, hidden_dim), dtype, -s1, s1)
    b1 = jax.random.uniform(k2, (1, hidden_dim), dtype, -s1, s1)
    w2 = jax.random.uniform(k3, (hidden_dim, output_dim), dtype, -s2, s2)
    b2 = jax.random.uniform(k4, (1, output_dim), dtype, -s2, s2)
    return w1, b1, w2, b2


def _reference(x, w1, b1, w2, b2):
    return jnp.maximum(x @ w1 + b1, 0.0) @ w2 + b2


if __name__ == "__main__":
    key = jax.random.PRNGKey(0)
    kx, kp, kx2, kp2 = jax.random.split(key, 4)

    # --- Test 1: small MLP head (single tile per axis), exact f32 check. ---
    batch, input_dim, hidden_dim, output_dim = 8, 32, 64, 16
    x = jax.random.normal(kx, (batch, input_dim), jnp.float32)
    w1, b1, w2, b2 = init_mlp_params(kp, input_dim, hidden_dim, output_dim)
    ref = _reference(x, w1, b1, w2, b2)

    mlp_f32 = PallasMLP(w1, b1, w2, b2)
    out = mlp_f32(x)
    jax.block_until_ready(out)
    assert out.shape == (batch, output_dim)
    assert jnp.allclose(out, ref, atol=1e-5, rtol=1e-5)

    # bf16 compute path (available on v5e/v6e/v7x); f32 accumulation, so the
    # only precision loss is the bf16 cast of weights/activations.
    mlp_bf16 = PallasMLP(w1, b1, w2, b2, compute_dtype=jnp.bfloat16)
    out_bf16 = mlp_bf16(x)
    jax.block_until_ready(out_bf16)
    assert out_bf16.shape == (batch, output_dim)
    assert jnp.allclose(out_bf16.astype(jnp.float32), ref, atol=5e-2, rtol=5e-2)

    # --- Test 2: force a multi-tile (i, j, k) grid to exercise the fc1 cache
    # across j, the k-accumulator, and padding on every axis. ---
    b2_, in2, hid2, out2 = 32, 160, 384, 200
    x2 = jax.random.normal(kx2, (b2_, in2), jnp.float32)
    p2 = init_mlp_params(kp2, in2, hid2, out2)
    ref2 = _reference(x2, *p2)
    mlp_multi = PallasMLP(*p2, tm=16, tn=128, tk=128)   # grid = (2, 2, 3)
    out2_k = mlp_multi(x2)
    jax.block_until_ready(out2_k)
    assert out2_k.shape == (b2_, out2)
    # Split-K accumulation order differs from the single-dot reference under
    # the default TPU matmul precision -> modest tolerance.
    assert jnp.allclose(out2_k, ref2, atol=2e-2, rtol=2e-2)

    print("KERNEL_OK")
</pallas_src>

<mosaic_0001>
module attributes {stable_mosaic.version = 11 : i64} {
  func.func @_mlp_kernel(%arg0: i32, %arg1: i32, %arg2: i32, %arg3: memref<8x128xf32, #tpu.memory_space<vmem>>, %arg4: memref<128x128xf32, #tpu.memory_space<vmem>>, %arg5: memref<1x128xf32, #tpu.memory_space<vmem>>, %arg6: memref<128x128xf32, #tpu.memory_space<vmem>>, %arg7: memref<1x128xf32, #tpu.memory_space<vmem>>, %arg8: memref<8x128xf32, #tpu.memory_space<vmem>>, %arg9: memref<1x8x128xf32, #tpu.memory_space<vmem>>, %arg10: memref<8x128xf32, #tpu.memory_space<vmem>>) attributes {dimension_semantics = [#tpu.dimension_semantics<parallel>, #tpu.dimension_semantics<arbitrary>, #tpu.dimension_semantics<arbitrary>], iteration_bounds = array<i64: 1, 1, 1>, scalar_prefetch = 0 : i64, scratch_operands = 2 : i64, tpu.core_type = #tpu.core_type<tc>, window_params = [{transform_indices = @transform_0, window_bounds = array<i64: 8, 128>}, {transform_indices = @transform_1, window_bounds = array<i64: 128, 128>}, {transform_indices = @transform_2, window_bounds = array<i64: 1, 128>}, {transform_indices = @transform_3, window_bounds = array<i64: 128, 128>}, {transform_indices = @transform_4, window_bounds = array<i64: 1, 128>}, {transform_indices = @transform_5, window_bounds = array<i64: 8, 128>}]} {
    %c0_i32 = arith.constant 0 : i32
    %0 = arith.cmpi eq, %arg2, %c0_i32 : i32
    %1 = arith.extui %0 : i1 to i32
    %c0_i32_0 = arith.constant 0 : i32
    %2 = arith.cmpi ne, %1, %c0_i32_0 : i32
    scf.if %2 {
      %cst_12 = arith.constant 0.000000e+00 : f32
      %17 = vector.broadcast %cst_12 : f32 to vector<8x128xf32>
      %c0_13 = arith.constant 0 : index
      %c0_14 = arith.constant 0 : index
      %18 = vector.load %arg10[%c0_13, %c0_14] : memref<8x128xf32, #tpu.memory_space<vmem>>, vector<8x128xf32>
      tpu.vector_store %arg10[%c0_13, %c0_14], %17 {strides = array<i32>} : memref<8x128xf32, #tpu.memory_space<vmem>>, vector<8x128xf32>,
    } else {
    }
    %c0_i32_1 = arith.constant 0 : i32
    %3 = arith.cmpi eq, %arg1, %c0_i32_1 : i32
    %4 = arith.extui %3 : i1 to i32
    %c0_i32_2 = arith.constant 0 : i32
    %5 = arith.cmpi ne, %4, %c0_i32_2 : i32
    scf.if %5 {
      %c0_12 = arith.constant 0 : index
      %c0_13 = arith.constant 0 : index
      %17 = vector.load %arg3[%c0_12, %c0_13] : memref<8x128xf32, #tpu.memory_space<vmem>>, vector<8x128xf32>
      %c0_14 = arith.constant 0 : index
      %c0_15 = arith.constant 0 : index
      %18 = vector.load %arg4[%c0_14, %c0_15] : memref<128x128xf32, #tpu.memory_space<vmem>>, vector<128x128xf32>
      %cst_16 = arith.constant dense<0.000000e+00> : vector<8x128xf32>
      %19 = tpu.matmul %17, %18, %cst_16 {dimension_numbers = #tpu.dot_dimension_numbers<[1], [0], [0], [1], [0, 0, 1, 1], [], []>} : vector<8x128xf32>, vector<128x128xf32>, vector<8x128xf32> -> vector<8x128xf32>
      %c0_17 = arith.constant 0 : index
      %c0_18 = arith.constant 0 : index
      %20 = vector.load %arg5[%c0_17, %c0_18] : memref<1x128xf32, #tpu.memory_space<vmem>>, vector<1x128xf32>
      %21 = vector.broadcast %20 : vector<1x128xf32> to vector<8x128xf32>
      %22 = arith.addf %19, %21 : vector<8x128xf32>
      %cst_19 = arith.constant 0.000000e+00 : f32
      %23 = vector.broadcast %cst_19 : f32 to vector<8x128xf32>
      %24 = arith.maximumf %22, %23 : vector<8x128xf32>
      %25 = arith.index_cast %arg2 : i32 to index
      %c0_20 = arith.constant 0 : index
      %c0_21 = arith.constant 0 : index
      %26 = vector.load %arg9[%25, %c0_20, %c0_21] : memref<1x8x128xf32, #tpu.memory_space<vmem>>, vector<1x8x128xf32>
      %27 = vector.shape_cast %26 : vector<1x8x128xf32> to vector<8x128xf32>
      %28 = vector.shape_cast %24 : vector<8x128xf32> to vector<1x8x128xf32>
      tpu.vector_store %arg9[%25, %c0_20, %c0_21], %28 {strides = array<i32>} : memref<1x8x128xf32, #tpu.memory_space<vmem>>, vector<1x8x128xf32>,
    } else {
    }
    %c0 = arith.constant 0 : index
    %c0_3 = arith.constant 0 : index
    %6 = vector.load %arg10[%c0, %c0_3] : memref<8x128xf32, #tpu.memory_space<vmem>>, vector<8x128xf32>
    %7 = arith.index_cast %arg2 : i32 to index
    %c0_4 = arith.constant 0 : index
    %c0_5 = arith.constant 0 : index
    %8 = vector.load %arg9[%7, %c0_4, %c0_5] : memref<1x8x128xf32, #tpu.memory_space<vmem>>, vector<1x8x128xf32>
    %9 = vector.shape_cast %8 : vector<1x8x128xf32> to vector<8x128xf32>
    %c0_6 = arith.constant 0 : index
    %c0_7 = arith.constant 0 : index
    %10 = vector.load %arg6[%c0_6, %c0_7] : memref<128x128xf32, #tpu.memory_space<vmem>>, vector<128x128xf32>
    %cst = arith.constant dense<0.000000e+00> : vector<8x128xf32>
    %11 = tpu.matmul %9, %10, %cst {dimension_numbers = #tpu.dot_dimension_numbers<[1], [0], [0], [1], [0, 0, 1, 1], [], []>} : vector<8x128xf32>, vector<128x128xf32>, vector<8x128xf32> -> vector<8x128xf32>
    %12 = arith.addf %6, %11 : vector<8x128xf32>
    %c0_8 = arith.constant 0 : index
    %c0_9 = arith.constant 0 : index
    %13 = vector.load %arg10[%c0_8, %c0_9] : memref<8x128xf32, #tpu.memory_space<vmem>>, vector<8x128xf32>
    tpu.vector_store %arg10[%c0_8, %c0_9], %12 {strides = array<i32>} : memref<8x128xf32, #tpu.memory_space<vmem>>, vector<8x128xf32>,
    %c0_i32_10 = arith.constant 0 : i32
    %14 = arith.cmpi eq, %arg2, %c0_i32_10 : i32
    %15 = arith.extui %14 : i1 to i32
    %c0_i32_11 = arith.constant 0 : i32
    %16 = arith.cmpi ne, %15, %c0_i32_11 : i32
    scf.if %16 {
      %c0_12 = arith.constant 0 : index
      %c0_13 = arith.constant 0 : index
      %17 = vector.load %arg10[%c0_12, %c0_13] : memref<8x128xf32, #tpu.memory_space<vmem>>, vector<8x128xf32>
      %c0_14 = arith.constant 0 : index
      %c0_15 = arith.constant 0 : index
      %18 = vector.load %arg7[%c0_14, %c0_15] : memref<1x128xf32, #tpu.memory_space<vmem>>, vector<1x128xf32>
      %19 = vector.broadcast %18 : vector<1x128xf32> to vector<8x128xf32>
      %20 = arith.addf %17, %19 : vector<8x128xf32>
      %c0_16 = arith.constant 0 : index
      %c0_17 = arith.constant 0 : index
      %21 = vector.load %arg8[%c0_16, %c0_17] : memref<8x128xf32, #tpu.memory_space<vmem>>, vector<8x128xf32>
      tpu.vector_store %arg8[%c0_16, %c0_17], %20 {strides = array<i32>} : memref<8x128xf32, #tpu.memory_space<vmem>>, vector<8x128xf32>,
    } else {
    }
    return
  }
  func.func @transform_0(%arg0: i32, %arg1: i32, %arg2: i32) -> (i32, i32) {
    %c0_i32 = arith.constant 0 : i32
    %c0_i32_0 = arith.constant 0 : i32
    return %arg0, %c0_i32 : i32, i32
  }
  func.func @transform_1(%arg0: i32, %arg1: i32, %arg2: i32) -> (i32, i32) {
    %c0_i32 = arith.constant 0 : i32
    %c0_i32_0 = arith.constant 0 : i32
    return %c0_i32, %arg2 : i32, i32
  }
  func.func @transform_2(%arg0: i32, %arg1: i32, %arg2: i32) -> (i32, i32) {
    %c0_i32 = arith.constant 0 : i32
    %c0_i32_0 = arith.constant 0 : i32
    return %c0_i32, %arg2 : i32, i32
  }
  func.func @transform_3(%arg0: i32, %arg1: i32, %arg2: i32) -> (i32, i32) {
    %c0_i32 = arith.constant 0 : i32
    return %arg2, %arg1 : i32, i32
  }
  func.func @transform_4(%arg0: i32, %arg1: i32, %arg2: i32) -> (i32, i32) {
    %c0_i32 = arith.constant 0 : i32
    %c0_i32_0 = arith.constant 0 : i32
    return %c0_i32, %arg1 : i32, i32
  }
  func.func @transform_5(%arg0: i32, %arg1: i32, %arg2: i32) -> (i32, i32) {
    %c0_i32 = arith.constant 0 : i32
    return %arg0, %arg1 : i32, i32
  }
}

</mosaic_0001>

<llo_original>
// kernel: _mlp_forward.1
$region0: #{_mlp_forward.1}
  #allocation0 [shape = 'u32[]', space=smem, size = 0x4, offset = 0x4, fixed_abs, tag = 'smem constant byte address 0x4 - core index']
  #allocation1 [shape = 'u32[144,128]{1,0:T(1,128)}', space=vmem, size = 0x12000, scoped, tag = 'internal scratch']
  #allocation2 [shape = 'f32[1,8,128]{2,1,0:T(8,128)}', space=vmem, size = 0x1000, scoped, tag = 'scratch operand']
  #allocation3 [shape = 'f32[8,128]{1,0:T(8,128)}', space=vmem, size = 0x1000, scoped, tag = 'scratch operand']
  %s0 = inlined_call_operand.vmem [shape: f32[8,128], index: 0, kind: input, shape index: {}]
  %s1 = inlined_call_operand.hbm [shape: f32[128,128], index: 1, kind: input, shape index: {}]
  %s2 = inlined_call_operand.vmem [shape: f32[1,128], index: 2, kind: input, shape index: {}]
  %s3 = inlined_call_operand.hbm [shape: f32[128,128], index: 3, kind: input, shape index: {}]
  %s4 = inlined_call_operand.vmem [shape: f32[1,128], index: 4, kind: input, shape index: {}]
  %s5 = inlined_call_operand.hbm [shape: f32[8,128], index: 5, kind: output, shape index: {}]
  %s6 = sld [smem:[#allocation0]]
  $region50: #{_mlp_forward.1} parent=0
    _
  %s8 = ssub.s32 1, %s6
  %s9 = scalar_select 0, %s8, %s6
  $region1: #{_mlp_forward.1} parent=0
    #allocation4 [shape = 'u8[65536]{0}', space=vmem, size = 0x10000, scoped, tag = 'input window, operand 1, single buffered']
    #allocation5 [shape = 's32[1]{0}', space=sflag, size = 0x4, scoped, tag = 'scoped memory for _mlp_forward.1']
    #allocation6 [shape = 's32[1]{0}', space=sflag, size = 0x4, scoped, tag = 'scoped memory for _mlp_forward.1']
    #allocation7 [shape = 'u8[65536]{0}', space=vmem, size = 0x10000, scoped, tag = 'input window, operand 3, single buffered']
    #allocation8 [shape = 's32[1]{0}', space=sflag, size = 0x4, scoped, tag = 'scoped memory for _mlp_forward.1']
    #allocation9 [shape = 'u8[4096]{0}', space=vmem, size = 0x1000, scoped, tag = 'output window, operand 0, single buffered']
    %10 = vsyncpa [#allocation5], 0
    %11 = vsyncpa [#allocation8], 0
    %12 = vsyncpa [#allocation6], 0
    // Predicated region
    $region2: #{_mlp_forward.1} parent=1 // pred_check
      _
    $region3: #{_mlp_forward.1} parent=1 // pred_check_branch
      %14 = sbr.rel (0) target = $region5
    $region4: #{_mlp_forward.1} parent=1 // pred_region
      _
    $region5: #{_mlp_forward.1} parent=1 // pred_fallthru
      _
    // Predicated region
    $region6: #{_mlp_forward.1} parent=1 // pred_check
      _
    $region7: #{_mlp_forward.1} parent=1 // pred_check_branch
      %16 = sbr.rel (0) target = $region9
    $region8: #{_mlp_forward.1} parent=1 // pred_region
      %s18 = ssub.s32 2048, 2048
      %19 = vsyncadd [#allocation5], %s18
      %s20 = sshll.u32 [#allocation4], 4
      %s21 = int_to_ptr.vmem [resolvable:$true] %s20
      %26 = dma.hbm_to_vmem [thread:$0]  %s1, 2048, %s21, [#allocation5], 128, 128, 8
    $region9: #{_mlp_forward.1} parent=1 // pred_fallthru
      _
    // Predicated region
    $region10: #{_mlp_forward.1} parent=1 // pred_check
      _
    $region11: #{_mlp_forward.1} parent=1 // pred_check_branch
      %28 = sbr.rel (0) target = $region13
    $region12: #{_mlp_forward.1} parent=1 // pred_region
      _
    $region13: #{_mlp_forward.1} parent=1 // pred_fallthru
      _
    // Predicated region
    $region14: #{_mlp_forward.1} parent=1 // pred_check
      _
    $region15: #{_mlp_forward.1} parent=1 // pred_check_branch
      %30 = sbr.rel (0) target = $region17
    $region16: #{_mlp_forward.1} parent=1 // pred_region
      %s32 = ssub.s32 2048, 2048
      %33 = vsyncadd [#allocation8], %s32
      %s34 = sshll.u32 [#allocation7], 4
      %s35 = int_to_ptr.vmem [resolvable:$true] %s34
      %40 = dma.hbm_to_vmem [thread:$0]  %s3, 2048, %s35, [#allocation8], 128, 128, 8
    $region17: #{_mlp_forward.1} parent=1 // pred_fallthru
      _
    // Predicated region
    $region18: #{_mlp_forward.1} parent=1 // pred_check
      _
    $region19: #{_mlp_forward.1} parent=1 // pred_check_branch
      %42 = sbr.rel (0) target = $region21
    $region20: #{_mlp_forward.1} parent=1 // pred_region
      _
    $region21: #{_mlp_forward.1} parent=1 // pred_fallthru
      _
    // Predicated region
    $region22: #{_mlp_forward.1} parent=1 // pred_check
      _
    $region23: #{_mlp_forward.1} parent=1 // pred_check_branch
      %44 = sbr.rel (0) target = $region25
    $region24: #{_mlp_forward.1} parent=1 // pred_region
      %45 = dma.done [#allocation5], 2048
    $region25: #{_mlp_forward.1} parent=1 // pred_fallthru
      _
    // Predicated region
    $region26: #{_mlp_forward.1} parent=1 // pred_check
      _
    $region27: #{_mlp_forward.1} parent=1 // pred_check_branch
      %47 = sbr.rel (0) target = $region29
    $region28: #{_mlp_forward.1} parent=1 // pred_region
      %48 = dma.done [#allocation8], 2048
    $region29: #{_mlp_forward.1} parent=1 // pred_fallthru
      _
    %p49 = scmp.eq.s32.totalorder 0, 0
    // Predicated region
    $region30: #{_mlp_forward.1} parent=1 // pred_check
      %p50 = pneg %p49
    $region31: #{_mlp_forward.1} parent=1 // pred_check_branch
      %52 = sbr.rel (%p50) target = $region33
    $region32: #{_mlp_forward.1} parent=1 // pred_region
      %53 = vst [vmem:[#allocation3] sm:$0xff] 0.0
    $region33: #{_mlp_forward.1} parent=1 // pred_fallthru
      _
    %p54 = scmp.eq.s32.totalorder 0, 0
    // Predicated region
    $region34: #{_mlp_forward.1} parent=1 // pred_check
      %p55 = pneg %p54
    $region35: #{_mlp_forward.1} parent=1 // pred_check_branch
      %57 = sbr.rel (%p55) target = $region37
    $region36: #{_mlp_forward.1} parent=1 // pred_region
      %v58 = vld [vmem:[%s0] sm:$0xff]
      %v59 = vld [vmem:[#allocation4] sm:$0xff]
      %v60 = vld [vmem:[#allocation4 + $0x8] sm:$0xff]
      %v61 = vld [vmem:[#allocation4 + $0x10] sm:$0xff]
      %v62 = vld [vmem:[#allocation4 + $0x18] sm:$0xff]
      %v63 = vld [vmem:[#allocation4 + $0x20] sm:$0xff]
      %v64 = vld [vmem:[#allocation4 + $0x28] sm:$0xff]
      %v65 = vld [vmem:[#allocation4 + $0x30] sm:$0xff]
      %v66 = vld [vmem:[#allocation4 + $0x38] sm:$0xff]
      %v67 = vld [vmem:[#allocation4 + $0x40] sm:$0xff]
      %v68 = vld [vmem:[#allocation4 + $0x48] sm:$0xff]
      %v69 = vld [vmem:[#allocation4 + $0x50] sm:$0xff]
      %v70 = vld [vmem:[#allocation4 + $0x58] sm:$0xff]
      %v71 = vld [vmem:[#allocation4 + $0x60] sm:$0xff]
      %v72 = vld [vmem:[#allocation4 + $0x68] sm:$0xff]
      %v73 = vld [vmem:[#allocation4 + $0x70] sm:$0xff]
      %v74 = vld [vmem:[#allocation4 + $0x78] sm:$0xff]
      %v75 = vld [vmem:[%s2] sm:$0x1]
      %v77 = vlaneseq
      %v78 = vshrl.u32 %v77, 7
      %v79 = vsub.s32 0, %v78
      %v80 = vrot.slane %v75, %v79
      %82 = vmatprep.subr.mxu0 0.0
      %83 = vmatpush1.msra.mxu0 %v74
      %84 = vmatprep.subr.mxu0 0.0
      %85 = vmatpush1.msra.mxu0 %v73
      %86 = vmatprep.subr.mxu0 0.0
      %87 = vmatpush1.msra.mxu0 %v72
      %88 = vmatprep.subr.mxu0 0.0
      %89 = vmatpush1.msra.mxu0 %v71
      %90 = vmatprep.subr.mxu0 0.0
      %91 = vmatpush1.msra.mxu0 %v70
      %92 = vmatprep.subr.mxu0 0.0
      %93 = vmatpush1.msra.mxu0 %v69
      %94 = vmatprep.subr.mxu0 0.0
      %95 = vmatpush1.msra.mxu0 %v68
      %96 = vmatprep.subr.mxu0 0.0
      %97 = vmatpush1.msra.mxu0 %v67
      %98 = vmatprep.subr.mxu0 0.0
      %99 = vmatpush1.msra.mxu0 %v66
      %100 = vmatprep.subr.mxu0 0.0
      %101 = vmatpush1.msra.mxu0 %v65
      %102 = vmatprep.subr.mxu0 0.0
      %103 = vmatpush1.msra.mxu0 %v64
      %104 = vmatprep.subr.mxu0 0.0
      %105 = vmatpush1.msra.mxu0 %v63
      %106 = vmatprep.subr.mxu0 0.0
      %107 = vmatpush1.msra.mxu0 %v62
      %108 = vmatprep.subr.mxu0 0.0
      %109 = vmatpush1.msra.mxu0 %v61
      %110 = vmatprep.subr.mxu0 0.0
      %111 = vmatpush1.msra.mxu0 %v60
      %112 = vmatprep.subr.mxu0 0.0
      %113 = vmatpush1.msra.mxu0 %v59
      %114 = vmatprep.subr.mxu0 0.0
      %115 = vmatpush2.msra.mxu0 0.0
      %116 = vmatprep.subr.mxu0 0.0
      %117 = vmatpush2.msra.mxu0 0.0
      %118 = vmatprep.subr.mxu0 0.0
      %119 = vmatpush2.msra.mxu0 0.0
      %120 = vmatprep.subr.mxu0 0.0
      %121 = vmatpush2.msra.mxu0 0.0
      %122 = vmatprep.subr.mxu0 0.0
      %123 = vmatpush2.msra.mxu0 0.0
      %124 = vmatprep.subr.mxu0 0.0
      %125 = vmatpush2.msra.mxu0 0.0
      %126 = vmatprep.subr.mxu0 0.0
      %127 = vmatpush2.msra.mxu0 0.0
      %128 = vmatprep.subr.mxu0 0.0
      %129 = vmatpush2.msra.mxu0 0.0
      %130 = vmatprep.subr.mxu0 0.0
      %131 = vmatpush2.msra.mxu0 0.0
      %132 = vmatprep.subr.mxu0 0.0
      %133 = vmatpush2.msra.mxu0 0.0
      %134 = vmatprep.subr.mxu0 0.0
      %135 = vmatpush2.msra.mxu0 0.0
      %136 = vmatprep.subr.mxu0 0.0
      %137 = vmatpush2.msra.mxu0 0.0
      %138 = vmatprep.subr.mxu0 0.0
      %139 = vmatpush2.msra.mxu0 0.0
      %140 = vmatprep.subr.mxu0 0.0
      %141 = vmatpush2.msra.mxu0 0.0
      %142 = vmatprep.subr.mxu0 0.0
      %143 = vmatpush2.msra.mxu0 0.0
      %144 = vmatprep.subr.mxu0 0.0
      %145 = vmatpush2.msra.mxu0 0.0
      %146 = vmatprep.mubr.f32.mxu0 0.0
      %147 = vmatmul.mubr.f32.gmra.mxu0 %v58
      %v148 = vpop.f32.mrf.mxu0
      %v149 = vadd.f32 %v80, %v148
      %v150 = vpop.f32.mrf.mxu0
      %151 = vdwg.mxu0
      %v152 = vmax.f32 %v149, 0.0
      %s153 = smul.u32 0, 8
      %s154 = scalar_lea.vmem [#allocation2], %s153
      %155 = vst [vmem:[%s154] sm:$0xff] %v152
    $region37: #{_mlp_forward.1} parent=1 // pred_fallthru
      _
    %v156 = vld [vmem:[#allocation3] sm:$0xff]
    %s157 = smul.u32 0, 8
    %s158 = scalar_lea.vmem [#allocation2], %s157
    %v159 = vld [vmem:[%s158] sm:$0xff]
    %v160 = vld [vmem:[#allocation7] sm:$0xff]
    %v161 = vld [vmem:[#allocation7 + $0x8] sm:$0xff]
    %v162 = vld [vmem:[#allocation7 + $0x10] sm:$0xff]
    %v163 = vld [vmem:[#allocation7 + $0x18] sm:$0xff]
    %v164 = vld [vmem:[#allocation7 + $0x20] sm:$0xff]
    %v165 = vld [vmem:[#allocation7 + $0x28] sm:$0xff]
    %v166 = vld [vmem:[#allocation7 + $0x30] sm:$0xff]
    %v167 = vld [vmem:[#allocation7 + $0x38] sm:$0xff]
    %v168 = vld [vmem:[#allocation7 + $0x40] sm:$0xff]
    %v169 = vld [vmem:[#allocation7 + $0x48] sm:$0xff]
    %v170 = vld [vmem:[#allocation7 + $0x50] sm:$0xff]
    %v171 = vld [vmem:[#allocation7 + $0x58] sm:$0xff]
    %v172 = vld [vmem:[#allocation7 + $0x60] sm:$0xff]
    %v173 = vld [vmem:[#allocation7 + $0x68] sm:$0xff]
    %v174 = vld [vmem:[#allocation7 + $0x70] sm:$0xff]
    %v175 = vld [vmem:[#allocation7 + $0x78] sm:$0xff]
    %176 = vmatprep.subr.mxu0 0.0
    %177 = vmatpush1.msra.mxu0 %v175
    %178 = vmatprep.subr.mxu0 0.0
    %179 = vmatpush1.msra.mxu0 %v174
    %180 = vmatprep.subr.mxu0 0.0
    %181 = vmatpush1.msra.mxu0 %v173
    %182 = vmatprep.subr.mxu0 0.0
    %183 = vmatpush1.msra.mxu0 %v172
    %184 = vmatprep.subr.mxu0 0.0
    %185 = vmatpush1.msra.mxu0 %v171
    %186 = vmatprep.subr.mxu0 0.0
    %187 = vmatpush1.msra.mxu0 %v170
    %188 = vmatprep.subr.mxu0 0.0
    %189 = vmatpush1.msra.mxu0 %v169
    %190 = vmatprep.subr.mxu0 0.0
    %191 = vmatpush1.msra.mxu0 %v168
    %192 = vmatprep.subr.mxu0 0.0
    %193 = vmatpush1.msra.mxu0 %v167
    %194 = vmatprep.subr.mxu0 0.0
    %195 = vmatpush1.msra.mxu0 %v166
    %196 = vmatprep.subr.mxu0 0.0
    %197 = vmatpush1.msra.mxu0 %v165
    %198 = vmatprep.subr.mxu0 0.0
    %199 = vmatpush1.msra.mxu0 %v164
    %200 = vmatprep.subr.mxu0 0.0
    %201 = vmatpush1.msra.mxu0 %v163
    %202 = vmatprep.subr.mxu0 0.0
    %203 = vmatpush1.msra.mxu0 %v162
    %204 = vmatprep.subr.mxu0 0.0
    %205 = vmatpush1.msra.mxu0 %v161
    %206 = vmatprep.subr.mxu0 0.0
    %207 = vmatpush1.msra.mxu0 %v160
    %208 = vmatprep.subr.mxu0 0.0
    %209 = vmatpush2.msra.mxu0 0.0
    %210 = vmatprep.subr.mxu0 0.0
    %211 = vmatpush2.msra.mxu0 0.0
    %212 = vmatprep.subr.mxu0 0.0
    %213 = vmatpush2.msra.mxu0 0.0
    %214 = vmatprep.subr.mxu0 0.0
    %215 = vmatpush2.msra.mxu0 0.0
    %216 = vmatprep.subr.mxu0 0.0
    %217 = vmatpush2.msra.mxu0 0.0
    %218 = vmatprep.subr.mxu0 0.0
    %219 = vmatpush2.msra.mxu0 0.0
    %220 = vmatprep.subr.mxu0 0.0
    %221 = vmatpush2.msra.mxu0 0.0
    %222 = vmatprep.subr.mxu0 0.0
    %223 = vmatpush2.msra.mxu0 0.0
    %224 = vmatprep.subr.mxu0 0.0
    %225 = vmatpush2.msra.mxu0 0.0
    %226 = vmatprep.subr.mxu0 0.0
    %227 = vmatpush2.msra.mxu0 0.0
    %228 = vmatprep.subr.mxu0 0.0
    %229 = vmatpush2.msra.mxu0 0.0
    %230 = vmatprep.subr.mxu0 0.0
    %231 = vmatpush2.msra.mxu0 0.0
    %232 = vmatprep.subr.mxu0 0.0
    %233 = vmatpush2.msra.mxu0 0.0
    %234 = vmatprep.subr.mxu0 0.0
    %235 = vmatpush2.msra.mxu0 0.0
    %236 = vmatprep.subr.mxu0 0.0
    %237 = vmatpush2.msra.mxu0 0.0
    %238 = vmatprep.subr.mxu0 0.0
    %239 = vmatpush2.msra.mxu0 0.0
    %240 = vmatprep.mubr.f32.mxu0 0.0
    %241 = vmatmul.mubr.f32.gmra.mxu0 %v159
    %v242 = vpop.f32.mrf.mxu0
    %v243 = vadd.f32 0.0, %v242
    %v244 = vpop.f32.mrf.mxu0
    %245 = vdwg.mxu0
    %v246 = vadd.f32 %v156, %v243
    %247 = vst [vmem:[#allocation3] sm:$0xff] %v246
    // Predicated region
    $region38: #{_mlp_forward.1} parent=1 // pred_check
      %p248 = pneg %p49
    $region39: #{_mlp_forward.1} parent=1 // pred_check_branch
      %250 = sbr.rel (%p248) target = $region41
    $region40: #{_mlp_forward.1} parent=1 // pred_region
      %v251 = vld [vmem:[#allocation3] sm:$0xff]
      %v252 = vld [vmem:[%s4] sm:$0x1]
      %v254 = vlaneseq
      %v255 = vshrl.u32 %v254, 7
      %v256 = vsub.s32 0, %v255
      %v257 = vrot.slane %v252, %v256
      %v259 = vadd.f32 %v251, %v257
      %260 = vst [vmem:[#allocation9] sm:$0xff] %v259
    $region41: #{_mlp_forward.1} parent=1 // pred_fallthru
      _
    // Predicated region
    $region42: #{_mlp_forward.1} parent=1 // pred_check
      _
    $region43: #{_mlp_forward.1} parent=1 // pred_check_branch
      %262 = sbr.rel (0) target = $region45
    $region44: #{_mlp_forward.1} parent=1 // pred_region
      %s264 = ssub.s32 128, 128
      %265 = vsyncadd [#allocation6], %s264
      %s267 = sshll.u32 [#allocation9], 4
      %s268 = int_to_ptr.vmem [resolvable:$true] %s267
      %270 = dma.vmem_to_hbm [thread:$0]  %s268, 128, %s5, [#allocation6]
    $region45: #{_mlp_forward.1} parent=1 // pred_fallthru
      _
    // Predicated region
    $region46: #{_mlp_forward.1} parent=1 // pred_check
      _
    $region47: #{_mlp_forward.1} parent=1 // pred_check_branch
      %272 = sbr.rel (0) target = $region49
    $region48: #{_mlp_forward.1} parent=1 // pred_region
      %273 = dma.done [#allocation6], 128
    $region49: #{_mlp_forward.1} parent=1 // pred_fallthru
      _
    %274 = vsyncpa [#allocation5], 1
    %275 = vsyncpa [#allocation8], 1
    %276 = vsyncpa [#allocation6], 1

</llo_original>
